<compile_context>
chip_gen: v7x
topology: tpu7x:2x2x1
jax: 0.10.0
libtpu: 0.0.40
codegen_flags: <defaults>
</compile_context>

<pallas_src>
import jax
import jax.numpy as jnp
import numpy as np
from jax import lax
from jax.experimental import pallas as pl
from jax.experimental.pallas import tpu as pltpu


def _embedding_kernel(x_ref, w_ref, b_ref, o_ref):
    # x_ref: (1, L, TV) f32   -- native layout, TV on the lane axis
    # w_ref: (L, D)     bf16  -- VMEM-resident for the whole grid
    # b_ref: (1, D)     f32
    # o_ref: (1, TV, D) out_dtype (bf16 by default)
    x_bf = x_ref[0].astype(jnp.bfloat16)                       # (L, TV), VPU cast
    acc = lax.dot_general(                                     # contract over L (dim 0 of both)
        x_bf, w_ref[...],
        dimension_numbers=(((0,), (0,)), ((), ())),
        preferred_element_type=jnp.float32)                    # (TV, D), f32 accumulation
    o_ref[0] = (acc + b_ref[...]).astype(o_ref.dtype)          # bias broadcast + store cast


def _pick_variate_tile(V, B, *, align=128, cap=512):
    """Variate tile: lane axis of the x tile / sublane axis of the output tile.
    128-aligned where possible; never falls back to an unbounded full dimension."""
    if V <= cap:
        tv = V
    elif V % align == 0:
        tv = (cap // align) * align
        while V % tv != 0:
            tv -= align
    else:
        # Unaligned large V: cdiv grid with a 128-aligned tile; Pallas masks the edge block.
        tv = (cap // align) * align
    # v7x has 2 TensorCores sharded over "parallel" grid axes: with a single batch make sure
    # the variate axis provides >= 2 blocks (essentially free ~2x on single-batch inference).
    if B == 1 and -(-V // tv) < 2 and V >= 2 * align:
        tv = max(align, ((V // 2 + align - 1) // align) * align)
    return tv


def prepare_params(weight, bias):
    """Once-per-model parameter prep (hoisted out of the per-call path).
    torch nn.Linear(c_in=L, d_model=D): weight (D, L), bias (D,)."""
    w_t = jnp.transpose(weight, (1, 0)).astype(jnp.bfloat16)   # (L, D) -- MXU operand
    b2d = bias.reshape(1, -1).astype(jnp.float32)              # (1, D) -- f32 epilogue
    return w_t, b2d


def data_embedding_inverted(x, x_mark, w_t, b2d, *, out_dtype=jnp.bfloat16,
                            variate_tile_cap=512):
    """x: (B, L, N) f32 ; x_mark: (B, L, M) f32 or None ; w_t: (L, D) bf16 ; b2d: (1, D) f32."""
    if x_mark is not None:
        # Contiguous last-axis concat in the native layout (the permute is fused in-kernel).
        x_cat = jnp.concatenate([x, x_mark], axis=-1)          # (B, L, N+M)
    else:
        x_cat = x

    B, L, V = x_cat.shape
    D = w_t.shape[1]

    tv = _pick_variate_tile(V, B, cap=variate_tile_cap)
    num_v = -(-V // tv)                                        # cdiv; edge block masked by Pallas
    grid = (B, num_v)

    return pl.pallas_call(
        _embedding_kernel,
        out_shape=jax.ShapeDtypeStruct((B, V, D), out_dtype),
        grid_spec=pltpu.PrefetchScalarGridSpec(
            num_scalar_prefetch=0,
            grid=grid,
            in_specs=[
                pl.BlockSpec((1, L, tv), lambda b, v: (b, 0, v)),   # activations, native layout
                pl.BlockSpec((L, D),     lambda b, v: (0, 0)),      # weight: fetched once, resident
                pl.BlockSpec((1, D),     lambda b, v: (0, 0)),      # bias:   fetched once, resident
            ],
            out_specs=pl.BlockSpec((1, tv, D), lambda b, v: (b, v, 0)),
        ),
        compiler_params=pltpu.CompilerParams(
            # L is contracted inside each step -> no cross-grid reduction; both axes parallel
            # (megacore-shardable on v7x).
            dimension_semantics=("parallel", "parallel"),
        ),
    )(x_cat, w_t, b2d)


def reference_fp32(x, x_mark, weight, bias):
    """Pure-JAX f32 reference of the PyTorch forward (dropout = identity in eval)."""
    x_cat = x if x_mark is None else jnp.concatenate([x, x_mark], axis=-1)
    x_t = jnp.transpose(x_cat, (0, 2, 1))
    return jnp.einsum("bvl,dl->bvd", x_t, weight) + bias


def reference_bf16_operands(x, x_mark, weight, bias):
    """Same arithmetic as the kernel: bf16 operands, f32 accumulation, f32 result."""
    x_cat = x if x_mark is None else jnp.concatenate([x, x_mark], axis=-1)
    x_t = jnp.transpose(x_cat, (0, 2, 1)).astype(jnp.bfloat16).astype(jnp.float32)
    w = weight.astype(jnp.bfloat16).astype(jnp.float32)
    return jnp.einsum("bvl,dl->bvd", x_t, w) + bias


if __name__ == "__main__":
    # Small shapes consistent with the module: batch=2, seq_len(c_in)=8, variates=4,
    # time-mark features=3, d_model=128 (lane-dense output).
    B, L, N, M, D = 2, 8, 4, 3, 128

    key = jax.random.PRNGKey(0)
    kx, km, kw, kb = jax.random.split(key, 4)
    x = jax.random.normal(kx, (B, L, N), dtype=jnp.float32)
    x_mark = jax.random.normal(km, (B, L, M), dtype=jnp.float32)

    # torch nn.Linear default init: U(-1/sqrt(fan_in), 1/sqrt(fan_in)) with fan_in = L
    bound = 1.0 / (L ** 0.5)
    weight = jax.random.uniform(kw, (D, L), jnp.float32, minval=-bound, maxval=bound)
    bias = jax.random.uniform(kb, (D,), jnp.float32, minval=-bound, maxval=bound)

    w_t, b2d = prepare_params(weight, bias)

    ref_cat = reference_bf16_operands(x, x_mark, weight, bias)
    ref_cat_f32 = reference_fp32(x, x_mark, weight, bias)

    # Path 1: with x_mark (concat branch), default bf16 output.
    out_bf16 = jax.block_until_ready(data_embedding_inverted(x, x_mark, w_t, b2d))
    assert out_bf16.shape == (B, N + M, D)
    assert out_bf16.dtype == jnp.bfloat16
    np.testing.assert_allclose(
        np.asarray(out_bf16, dtype=np.float32), np.asarray(ref_cat), rtol=2e-2, atol=2e-2)

    # Path 2: with x_mark, f32 output (precision knob) -- tight match to bf16-operand reference.
    out_f32 = jax.block_until_ready(
        data_embedding_inverted(x, x_mark, w_t, b2d, out_dtype=jnp.float32))
    assert out_f32.shape == (B, N + M, D) and out_f32.dtype == jnp.float32
    np.testing.assert_allclose(np.asarray(out_f32), np.asarray(ref_cat), rtol=1e-4, atol=1e-4)
    np.testing.assert_allclose(np.asarray(out_f32), np.asarray(ref_cat_f32), rtol=5e-2, atol=5e-2)

    # Path 3: x_mark is None.
    out2 = jax.block_until_ready(
        data_embedding_inverted(x, None, w_t, b2d, out_dtype=jnp.float32))
    assert out2.shape == (B, N, D)
    np.testing.assert_allclose(
        np.asarray(out2), np.asarray(reference_bf16_operands(x, None, weight, bias)),
        rtol=1e-4, atol=1e-4)

    print("KERNEL_OK")
</pallas_src>

<mosaic_0001>
module attributes {stable_mosaic.version = 11 : i64} {
  func.func @_embedding_kernel(%arg0: i32, %arg1: i32, %arg2: memref<1x8x7xf32, #tpu.memory_space<vmem>>, %arg3: memref<8x128xbf16, #tpu.memory_space<vmem>>, %arg4: memref<1x128xf32, #tpu.memory_space<vmem>>, %arg5: memref<1x7x128xbf16, #tpu.memory_space<vmem>>) attributes {dimension_semantics = [#tpu.dimension_semantics<parallel>, #tpu.dimension_semantics<parallel>], iteration_bounds = array<i64: 2, 1>, scalar_prefetch = 0 : i64, scratch_operands = 0 : i64, tpu.core_type = #tpu.core_type<tc>, window_params = [{transform_indices = @transform_0, window_bounds = array<i64: 1, 8, 7>}, {pipeline_mode = #tpu.pipeline_mode<synchronous>, transform_indices = @transform_1, window_bounds = array<i64: 8, 128>}, {pipeline_mode = #tpu.pipeline_mode<synchronous>, transform_indices = @transform_2, window_bounds = array<i64: 1, 128>}, {transform_indices = @transform_3, window_bounds = array<i64: 1, 7, 128>}]} {
    %c0 = arith.constant 0 : index
    %c0_0 = arith.constant 0 : index
    %c0_1 = arith.constant 0 : index
    %0 = vector.load %arg2[%c0, %c0_0, %c0_1] : memref<1x8x7xf32, #tpu.memory_space<vmem>>, vector<1x8x7xf32>
    %1 = vector.shape_cast %0 : vector<1x8x7xf32> to vector<8x7xf32>
    %2 = arith.truncf %1 : vector<8x7xf32> to vector<8x7xbf16>
    %c0_2 = arith.constant 0 : index
    %c0_3 = arith.constant 0 : index
    %3 = vector.load %arg3[%c0_2, %c0_3] : memref<8x128xbf16, #tpu.memory_space<vmem>>, vector<8x128xbf16>
    %cst = arith.constant dense<0.000000e+00> : vector<7x128xf32>
    %4 = tpu.matmul %2, %3, %cst {dimension_numbers = #tpu.dot_dimension_numbers<[0], [0], [1], [1], [0, 1, 1, 1], [], []>} : vector<8x7xbf16>, vector<8x128xbf16>, vector<7x128xf32> -> vector<7x128xf32>
    %c0_4 = arith.constant 0 : index
    %c0_5 = arith.constant 0 : index
    %5 = vector.load %arg4[%c0_4, %c0_5] : memref<1x128xf32, #tpu.memory_space<vmem>>, vector<1x128xf32>
    %6 = vector.broadcast %5 : vector<1x128xf32> to vector<7x128xf32>
    %7 = arith.addf %4, %6 : vector<7x128xf32>
    %8 = arith.truncf %7 : vector<7x128xf32> to vector<7x128xbf16>
    %c0_6 = arith.constant 0 : index
    %c0_7 = arith.constant 0 : index
    %c0_8 = arith.constant 0 : index
    %9 = vector.load %arg5[%c0_6, %c0_7, %c0_8] : memref<1x7x128xbf16, #tpu.memory_space<vmem>>, vector<1x7x128xbf16>
    %10 = vector.shape_cast %9 : vector<1x7x128xbf16> to vector<7x128xbf16>
    %11 = vector.shape_cast %8 : vector<7x128xbf16> to vector<1x7x128xbf16>
    tpu.vector_store %arg5[%c0_6, %c0_7, %c0_8], %11 {strides = array<i32>} : memref<1x7x128xbf16, #tpu.memory_space<vmem>>, vector<1x7x128xbf16>,
    return
  }
  func.func @transform_0(%arg0: i32, %arg1: i32) -> (i32, i32, i32) {
    %c0_i32 = arith.constant 0 : i32
    %c0_i32_0 = arith.constant 0 : i32
    return %arg0, %c0_i32, %arg1 : i32, i32, i32
  }
  func.func @transform_1(%arg0: i32, %arg1: i32) -> (i32, i32) {
    %c0_i32 = arith.constant 0 : i32
    %c0_i32_0 = arith.constant 0 : i32
    %c0_i32_1 = arith.constant 0 : i32
    return %c0_i32, %c0_i32_0 : i32, i32
  }
  func.func @transform_2(%arg0: i32, %arg1: i32) -> (i32, i32) {
    %c0_i32 = arith.constant 0 : i32
    %c0_i32_0 = arith.constant 0 : i32
    %c0_i32_1 = arith.constant 0 : i32
    return %c0_i32, %c0_i32_0 : i32, i32
  }
  func.func @transform_3(%arg0: i32, %arg1: i32) -> (i32, i32, i32) {
    %c0_i32 = arith.constant 0 : i32
    %c0_i32_0 = arith.constant 0 : i32
    return %arg0, %arg1, %c0_i32 : i32, i32, i32
  }
}

</mosaic_0001>

<llo_original>
// kernel: tpu_custom_call.1
$region0: #{tpu_custom_call.1}
  #allocation0 [shape = 'u32[]', space=smem, size = 0x4, offset = 0x4, fixed_abs, tag = 'smem constant byte address 0x4 - core index']
  #allocation1 [shape = 'u32[144,128]{1,0:T(1,128)}', space=vmem, size = 0x12000, scoped, tag = 'internal scratch']
  %s0 = inlined_call_operand.vmem [shape: f32[2,8,7], index: 0, kind: input, shape index: {}]
  %s1 = inlined_call_operand.vmem [shape: bf16[8,128], index: 1, kind: input, shape index: {}]
  %s2 = inlined_call_operand.vmem [shape: f32[1,128], index: 2, kind: input, shape index: {}]
  %s3 = inlined_call_operand.vmem [shape: bf16[2,7,128], index: 3, kind: output, shape index: {}]
  %s4 = sld [smem:[#allocation0]]
  $region45: #{tpu_custom_call.1} parent=0
    _
  %s6 = ssub.s32 1, %s4
  %s7 = scalar_select 0, %s6, %s4
  loop: start=0, step=1, limit=4
  $region2: #{tpu_custom_call.1} parent=0 // loop_pre_header
    _
  $region3: #{tpu_custom_call.1} parent=0 // loop_header
    %s9 = sphi 0, %s13
    %p10 = scmp.ge.s32.totalorder %s9, 4
    %s16 = sphi 0, %s28
    %s17 = sphi 0, %s24
    %s18 = sphi 0, %s16
    %s19 = sphi 0, %s17
    %s20 = sphi 0, %s18
    %s21 = sphi 0, %s19
    %s33 = sphi 0, %s35
    %s36 = sphi 0, %s33
    %s37 = sphi 0, %s36
    %s53 = sphi 0, %s37
    %s57 = sphi 0, %s57
    %s59 = sphi 0, %s57
    %s60 = sphi 0, %s59
    %s74 = sphi 0, %s60
    %s78 = sphi 0, %s78
    %s80 = sphi 0, %s78
    %s81 = sphi 0, %s80
    %s95 = sphi 0, %s81
    %s103 = sphi 0, %s105
    %s106 = sphi 0, %s103
    %s107 = sphi 0, %s106
    %s123 = sphi 0, %s107
  $region4: #{tpu_custom_call.1} parent=0 // loop_header_branch
    %12 = sbr.rel (%p10) target = $region8
  $region5: #{tpu_custom_call.1} parent=0 // loop_body
    %s14 = ssub.s32 %s9, 1
    %s15 = ssub.s32 %s9, 2
    %s22 = sadd.s32 1, %s17
    %p23 = scmp.ge.s32.totalorder %s22, 1
    %s24 = scalar_select %p23, 0, %s22
    %s25 = sadd.s32 1, %s16
    %s26 = scalar_select %p23, %s25, %s16
    %p27 = scmp.ge.s32.totalorder %s26, 2
    %s28 = scalar_select %p27, 0, %s26
    %s29 = ssub.s32 %s16, %s28
    %s30 = ssub.s32 %s17, %s24
    %s31 = sor.u32 %s29, %s30
    %p32 = scmp.eq.s32.totalorder %s31, 0
    %s34 = sadd.s32 %s33, 1
    %s35 = scalar_select %p32, %s33, %s34
    %p38 = pneg %p32
    %p39 = scmp.eq.s32.totalorder %s9, 1
    %p40 = por %p38, %p39
    %p41 = scmp.ne.s32.totalorder %s33, %s36
    %p42 = scmp.eq.s32.totalorder %s9, 0
    %p43 = por %p41, %p42
    %p44 = scmp.ne.s32.totalorder %s33, %s36
    %p45 = scmp.eq.s32.totalorder %s14, 1
    %p46 = por %p44, %p45
    %p47 = scmp.ne.s32.totalorder %s36, %s37
    %p48 = scmp.eq.s32.totalorder %s14, 0
    %p49 = por %p47, %p48
    %p50 = scmp.ne.s32.totalorder %s36, %s37
    %p51 = scmp.eq.s32.totalorder %s15, 1
    %p52 = por %p50, %p51
    %p54 = scmp.ne.s32.totalorder %s37, %s53
    %p55 = scmp.eq.s32.totalorder %s15, 0
    %p56 = por %p54, %p55
    %s58 = sadd.s32 %s57, 1
    %p61 = scmp.eq.s32.totalorder %s9, 1
    %p62 = scmp.ne.s32.totalorder %s57, %s59
    %p63 = scmp.eq.s32.totalorder %s9, 0
    %p64 = por %p62, %p63
    %p65 = scmp.ne.s32.totalorder %s57, %s59
    %p66 = scmp.eq.s32.totalorder %s14, 1
    %p67 = por %p65, %p66
    %p68 = scmp.ne.s32.totalorder %s59, %s60
    %p69 = scmp.eq.s32.totalorder %s14, 0
    %p70 = por %p68, %p69
    %p71 = scmp.ne.s32.totalorder %s59, %s60
    %p72 = scmp.eq.s32.totalorder %s15, 1
    %p73 = por %p71, %p72
    %p75 = scmp.ne.s32.totalorder %s60, %s74
    %p76 = scmp.eq.s32.totalorder %s15, 0
    %p77 = por %p75, %p76
    %s79 = sadd.s32 %s78, 1
    %p82 = scmp.eq.s32.totalorder %s9, 1
    %p83 = scmp.ne.s32.totalorder %s78, %s80
    %p84 = scmp.eq.s32.totalorder %s9, 0
    %p85 = por %p83, %p84
    %p86 = scmp.ne.s32.totalorder %s78, %s80
    %p87 = scmp.eq.s32.totalorder %s14, 1
    %p88 = por %p86, %p87
    %p89 = scmp.ne.s32.totalorder %s80, %s81
    %p90 = scmp.eq.s32.totalorder %s14, 0
    %p91 = por %p89, %p90
    %p92 = scmp.ne.s32.totalorder %s80, %s81
    %p93 = scmp.eq.s32.totalorder %s15, 1
    %p94 = por %p92, %p93
    %p96 = scmp.ne.s32.totalorder %s81, %s95
    %p97 = scmp.eq.s32.totalorder %s15, 0
    %p98 = por %p96, %p97
    %s99 = ssub.s32 %s16, %s28
    %s100 = ssub.s32 %s17, %s24
    %s101 = sor.u32 %s99, %s100
    %p102 = scmp.eq.s32.totalorder %s101, 0
    %s104 = sadd.s32 %s103, 1
    %s105 = scalar_select %p102, %s103, %s104
    %p108 = pneg %p102
    %p109 = scmp.eq.s32.totalorder %s9, 1
    %p110 = por %p108, %p109
    %p111 = scmp.ne.s32.totalorder %s103, %s106
    %p112 = scmp.eq.s32.totalorder %s9, 0
    %p113 = por %p111, %p112
    %p114 = scmp.ne.s32.totalorder %s103, %s106
    %p115 = scmp.eq.s32.totalorder %s14, 1
    %p116 = por %p114, %p115
    %p117 = scmp.ne.s32.totalorder %s106, %s107
    %p118 = scmp.eq.s32.totalorder %s14, 0
    %p119 = por %p117, %p118
    %p120 = scmp.ne.s32.totalorder %s106, %s107
    %p121 = scmp.eq.s32.totalorder %s15, 1
    %p122 = por %p120, %p121
    %p124 = scmp.ne.s32.totalorder %s107, %s123
    %p125 = scmp.eq.s32.totalorder %s15, 0
    %p126 = por %p124, %p125
    %p127 = scmp.le.s32.totalorder 1, %s9
    %p128 = scmp.lt.s32.totalorder %s9, 3
    %p129 = pnand %p127, %p128
    %p130 = pneg %p129
    // Predicated region
    $region9: #{tpu_custom_call.1} parent=5 // pred_check
      _
    $region10: #{tpu_custom_call.1} parent=5 // pred_check_branch
      %132 = sbr.rel (%p129) target = $region12
    $region11: #{tpu_custom_call.1} parent=5 // pred_region
      %s133 = ssub.s32 %s9, 1
      // Predicated region
      $region13: #{tpu_custom_call.1} parent=11 // pred_check
        %p134 = pneg %p70
      $region14: #{tpu_custom_call.1} parent=11 // pred_check_branch
        %136 = sbr.rel (%p134) target = $region16
      $region15: #{tpu_custom_call.1} parent=11 // pred_region
        _
      $region16: #{tpu_custom_call.1} parent=11 // pred_fallthru
        _
      // Predicated region
      $region17: #{tpu_custom_call.1} parent=11 // pred_check
        %p137 = pneg %p91
      $region18: #{tpu_custom_call.1} parent=11 // pred_check_branch
        %139 = sbr.rel (%p137) target = $region20
      $region19: #{tpu_custom_call.1} parent=11 // pred_region
        _
      $region20: #{tpu_custom_call.1} parent=11 // pred_fallthru
        _
    $region12: #{tpu_custom_call.1} parent=5 // pred_fallthru
      _
    %p140 = scmp.lt.s32.totalorder %s9, 2
    // Predicated region
    $region21: #{tpu_custom_call.1} parent=5 // pred_check
      %p141 = pneg %p140
    $region22: #{tpu_custom_call.1} parent=5 // pred_check_branch
      %143 = sbr.rel (%p141) target = $region24
    $region23: #{tpu_custom_call.1} parent=5 // pred_region
      // Predicated region
      $region25: #{tpu_custom_call.1} parent=23 // pred_check
        %p144 = pneg %p43
      $region26: #{tpu_custom_call.1} parent=23 // pred_check_branch
        %146 = sbr.rel (%p144) target = $region28
      $region27: #{tpu_custom_call.1} parent=23 // pred_region
        %p147 = scmp.lt.s32.totalorder %s16, 1
        %s148 = scalar_select %p147, %s16, 1
        %p149 = scmp.lt.s32.totalorder %s17, 0
        %s150 = scalar_select %p149, %s17, 0
        %s151 = sadd.s32 %s150, %s148
        %s152 = smul.addr %s151, 8
        %s153 = scalar_lea.vmem %s0, %s152
      $region28: #{tpu_custom_call.1} parent=23 // pred_fallthru
        _
    $region24: #{tpu_custom_call.1} parent=5 // pred_fallthru
      _
    %p154 = scmp.le.s32.totalorder 1, %s9
    %p155 = scmp.lt.s32.totalorder %s9, 3
    %p156 = pnand %p154, %p155
    %p157 = pneg %p156
    // Predicated region
    $region29: #{tpu_custom_call.1} parent=5 // pred_check
      _
    $region30: #{tpu_custom_call.1} parent=5 // pred_check_branch
      %159 = sbr.rel (%p156) target = $region32
    $region31: #{tpu_custom_call.1} parent=5 // pred_region
      %s160 = ssub.s32 %s9, 1
      %p161 = scmp.lt.s32.totalorder %s18, 1
      %s162 = scalar_select %p161, %s18, 1
      %p163 = scmp.lt.s32.totalorder %s19, 0
      %s164 = scalar_select %p163, %s19, 0
      %s165 = sadd.s32 %s164, %s162
      %s166 = smul.addr %s165, 8
      %s167 = scalar_lea.vmem %s0, %s166
      %p168 = pneg %p49
      %p169 = pneg %p46
      %p170 = pneg %p70
      %p171 = pneg %p67
      %p172 = pneg %p91
      %p173 = pneg %p88
      %p174 = pneg %p119
      %p175 = pneg %p116
      %p176 = scmp.lt.s32.totalorder %s18, 1
      %s177 = scalar_select %p176, %s18, 1
      %p178 = scmp.lt.s32.totalorder %s19, 0
      %s179 = scalar_select %p178, %s19, 0
      %s180 = sadd.s32 %s179, %s177
      %s181 = smul.addr %s180, 4
      %s182 = scalar_lea.vmem %s3, %s181
      %p183 = scmp.lt.s32.totalorder %s18, 1
      %s184 = scalar_select %p183, %s18, 1
      %p185 = scmp.lt.s32.totalorder %s19, 0
      %s186 = scalar_select %p185, %s19, 0
      %s187 = sadd.s32 %s186, %s184
      %s188 = smul.addr %s187, 8
      %s189 = scalar_lea.vmem %s0, %s188
      %p190 = scmp.lt.s32.totalorder %s18, 1
      %s191 = scalar_select %p190, %s18, 1
      %p192 = scmp.lt.s32.totalorder %s19, 0
      %s193 = scalar_select %p192, %s19, 0
      %s194 = sadd.s32 %s193, %s191
      %s195 = smul.addr %s194, 4
      %s196 = scalar_lea.vmem %s3, %s195
      %v198 = vld [vmem:[%s189] sm:$0xff]
      %v199 = vpack.c.bf16 %v198, %v198
      %v200 = vld [vmem:[%s1] sm:$0xf]
      %v201 = vld [vmem:[%s2] sm:$0x1]
      %v203 = vlaneseq
      %v204 = vshrl.u32 %v203, 7
      %v205 = vsub.s32 0, %v204
      %v206 = vrot.slane %v201, %v205
      %208 = vxpose.xlu0.c.b16.start [1/8] %v199, 128
      %209 = vxpose.xlu0.c.b16.cont [2/8] 0, 128
      %210 = vxpose.xlu0.c.b16.cont [3/8] 0, 128
      %211 = vxpose.xlu0.c.b16.cont [4/8] 0, 128
      %212 = vxpose.xlu0.c.b16.cont [5/8] 0, 128
      %213 = vxpose.xlu0.c.b16.cont [6/8] 0, 128
      %214 = vxpose.xlu0.c.b16.cont [7/8] 0, 128
      %215 = vxpose.xlu0.c.b16.end [8/8] 0, 128
      %v216 = vpop.trf.xlu0
      %v217 = vpop.trf.xlu0
      %v218 = vpop.trf.xlu0
      %v219 = vpop.trf.xlu0
      %v220 = vpop.trf.xlu0
      %v221 = vpop.trf.xlu0
      %v222 = vpop.trf.xlu0
      %v223 = vpop.trf.xlu0
      %vm224 = vcmask 64512
      %v226 = vsel %vm224, %v216, 0
      %vm228 = vcmask 1043456
      %v230 = vsel %vm228, %v200, 0
      %232 = vmatprep.subr.bf16.mxu0 0
      %233 = vmatpush1.bf16.msra.mxu0 %v230
      %234 = vmatprep.subr.bf16.mxu0 0
      %235 = vmatpush1.bf16.msra.mxu0 0
      %236 = vmatprep.subr.bf16.mxu0 0
      %237 = vmatpush1.bf16.msra.mxu0 0
      %238 = vmatprep.subr.bf16.mxu0 0
      %239 = vmatpush1.bf16.msra.mxu0 0
      %240 = vmatprep.subr.bf16.mxu0 0
      %241 = vmatpush1.bf16.msra.mxu0 0
      %242 = vmatprep.subr.bf16.mxu0 0
      %243 = vmatpush1.bf16.msra.mxu0 0
      %244 = vmatprep.subr.bf16.mxu0 0
      %245 = vmatpush1.bf16.msra.mxu0 0
      %246 = vmatprep.subr.bf16.mxu0 0
      %247 = vmatpush1.bf16.msra.mxu0 0
      %248 = vmatprep.subr.bf16.mxu0 0
      %249 = vmatpush1.bf16.msra.mxu0 0
      %250 = vmatprep.subr.bf16.mxu0 0
      %251 = vmatpush1.bf16.msra.mxu0 0
      %252 = vmatprep.subr.bf16.mxu0 0
      %253 = vmatpush1.bf16.msra.mxu0 0
      %254 = vmatprep.subr.bf16.mxu0 0
      %255 = vmatpush1.bf16.msra.mxu0 0
      %256 = vmatprep.subr.bf16.mxu0 0
      %257 = vmatpush1.bf16.msra.mxu0 0
      %258 = vmatprep.subr.bf16.mxu0 0
      %259 = vmatpush1.bf16.msra.mxu0 0
      %260 = vmatprep.subr.bf16.mxu0 0
      %261 = vmatpush1.bf16.msra.mxu0 0
      %262 = vmatprep.subr.bf16.mxu0 0
      %263 = vmatpush1.bf16.msra.mxu0 0
      %264 = vmatprep.mubr.bf16.mxu0 0
      %265 = vmatmul.mubr.bf16.gmra.mrb[0].mxu0 %v226
      %v266 = vpop.f32.mrb[0].mxu0
      %v267 = vadd.f32 %v206, %v266
      %v268 = vpop.f32.mrb[0].mxu0
      %v269 = vpop.f32.mrb[0].mxu0
      %v270 = vpop.f32.mrb[0].mxu0
      %271 = vdwg.mxu0
      %v272 = vpack.c.bf16 %v267, %v267
      %vm273 = vcmask 1043456
      %vm274 = vsmask.f32 3328
      %vm275 = vmand %vm273, %vm274
      %v276 = vld [vmem:[%s196] sm:$0xf]
      %v277 = vsel %vm275, %v272, %v276
      %278 = vst [vmem:[%s196] sm:$0xf] %v277
      %p279 = scmp.lt.s32.totalorder %s18, 1
      %s280 = scalar_select %p279, %s18, 1
      %p281 = scmp.lt.s32.totalorder %s19, 0
      %s282 = scalar_select %p281, %s19, 0
      %s283 = sadd.s32 %s282, %s280
      %s284 = smul.addr %s283, 4
      %s285 = scalar_lea.vmem %s3, %s284
      // Predicated region
      $region33: #{tpu_custom_call.1} parent=31 // pred_check
        %p286 = pneg %p116
      $region34: #{tpu_custom_call.1} parent=31 // pred_check_branch
        %288 = sbr.rel (%p286) target = $region36
      $region35: #{tpu_custom_call.1} parent=31 // pred_region
        _
      $region36: #{tpu_custom_call.1} parent=31 // pred_fallthru
        _
    $region32: #{tpu_custom_call.1} parent=5 // pred_fallthru
      _
    %p289 = scmp.le.s32.totalorder 2, %s9
    // Predicated region
    $region37: #{tpu_custom_call.1} parent=5 // pred_check
      %p290 = pneg %p289
    $region38: #{tpu_custom_call.1} parent=5 // pred_check_branch
      %292 = sbr.rel (%p290) target = $region40
    $region39: #{tpu_custom_call.1} parent=5 // pred_region
      %s293 = ssub.s32 %s9, 2
      // Predicated region
      $region41: #{tpu_custom_call.1} parent=39 // pred_check
        %p294 = pneg %p122
      $region42: #{tpu_custom_call.1} parent=39 // pred_check_branch
        %296 = sbr.rel (%p294) target = $region44
      $region43: #{tpu_custom_call.1} parent=39 // pred_region
        %p297 = scmp.lt.s32.totalorder %s20, 1
        %s298 = scalar_select %p297, %s20, 1
        %p299 = scmp.lt.s32.totalorder %s21, 0
        %s300 = scalar_select %p299, %s21, 0
        %s301 = sadd.s32 %s300, %s298
        %s302 = smul.addr %s301, 4
        %s303 = scalar_lea.vmem %s3, %s302
      $region44: #{tpu_custom_call.1} parent=39 // pred_fallthru
        _
    $region40: #{tpu_custom_call.1} parent=5 // pred_fallthru
      _
  $region6: #{tpu_custom_call.1} parent=0 // loop_footer
    %s13 = sadd.s32 1, %s9
  $region7: #{tpu_custom_call.1} parent=0 // loop_footer_branch
    %8 = sbr.rel target = $region3
  $region8: #{tpu_custom_call.1} parent=0 // loop_exit
    _

</llo_original>
